<compile_context>
chip_gen: v6e
topology: v6e:2x2x1
jax: 0.10.0
libtpu: 0.0.40
codegen_flags: <defaults>
</compile_context>

<pallas_src>
from functools import partial

import jax
import jax.numpy as jnp
from jax.experimental import pallas as pl
from jax.experimental.pallas import tpu as pltpu

HIDDEN = 40
CHUNK_LANES = 256      # compute sub-chunk (multiple of 128)
MAX_TILE_N = 4096      # DMA tile upper bound (multiple of CHUNK_LANES)


def _make_kernel(chunk, chunks_per_tile):
    def mlp_kernel(x_ref, w1_ref, b1_ref, w2_ref, b2_ref, w3_ref, b3_ref, o_ref):
        # Shapes (feature-major / transposed layout, batch on lanes):
        #   x_ref  : (1, tile_n)
        #   w1_ref : (40, 1)      b1_ref : (40, 1)
        #   w2_ref : (40, 40)     b2_ref : (40, 1)
        #   w3_ref : (1, 40)      b3_ref : SMEM (1,)
        #   o_ref  : (1, tile_n)

        # Hoist all loop-invariant reads out of the chunk loop.
        w1c = w1_ref[...]          # (40, 1)
        b1c = b1_ref[...]          # (40, 1)
        w2c = w2_ref[...]          # (40, 40)
        b2c = b2_ref[...]          # (40, 1)
        w3c = w3_ref[...]          # (1, 40)
        b3s = b3_ref[0]            # scalar

        def body(j, carry):
            start = pl.multiple_of(j * chunk, chunk)
            xc = x_ref[:, pl.ds(start, chunk)]                       # (1, chunk)

            # Layer 1: K=1 contraction -> VPU broadcast multiply.
            h1 = jnp.maximum(w1c * xc + b1c, 0.0)                    # (40, chunk)

            # Layer 2: (40,40) @ (40,chunk) on the MXU, lane-dense RHS.
            h2 = jnp.dot(w2c, h1, preferred_element_type=jnp.float32) + b2c
            h2 = jnp.maximum(h2, 0.0)                                # (40, chunk)

            # Layer 3: (1,40) @ (40,chunk) -> lane-dense (1, chunk).
            y = jnp.dot(w3c, h2, preferred_element_type=jnp.float32) + b3s
            o_ref[:, pl.ds(start, chunk)] = y.astype(o_ref.dtype)
            return carry

        jax.lax.fori_loop(0, chunks_per_tile, body, 0, unroll=True)

    return mlp_kernel


def _tile_config(n, *, chunk_lanes=CHUNK_LANES, max_tile_n=MAX_TILE_N):
    """Static (chunk, tile_n, n_pad) so lanes are dense and vregs never spill."""
    assert chunk_lanes % 128 == 0 and max_tile_n % chunk_lanes == 0
    n128 = ((n + 127) // 128) * 128
    chunk = min(chunk_lanes, n128)                     # multiple of 128
    n_chunks = (n128 + chunk - 1) // chunk
    max_cpt = max(1, max_tile_n // chunk)
    if n_chunks >= 2:
        # >= 2 grid steps so both v7x TensorCores get work.
        chunks_per_tile = min(max_cpt, max(1, n_chunks // 2))
    else:
        chunks_per_tile = 1
    tile_n = chunks_per_tile * chunk
    grid_steps = (n_chunks + chunks_per_tile - 1) // chunks_per_tile
    n_pad = grid_steps * tile_n
    return chunk, tile_n, n_pad


@partial(jax.jit, static_argnums=(7, 8, 9))
def _forward(x, w1, b1, w2, b2, w3, b3, chunk, tile_n, n_pad):
    N = x.shape[0]
    # Batch onto the lane axis; pad to a lane-dense multiple of tile_n.
    # (jitted together with the kernel so pad/reshape/slice fuse.)
    xT = jnp.pad(x.astype(jnp.float32).reshape(1, N), ((0, 0), (0, n_pad - N)))

    grid = (n_pad // tile_n,)
    kernel = _make_kernel(chunk, tile_n // chunk)

    batch_map = lambda i: (0, i)
    const_map = lambda i: (0, 0)

    flops = 2 * n_pad * (HIDDEN + HIDDEN * HIDDEN + HIDDEN)
    bytes_accessed = 4 * (2 * n_pad + HIDDEN * (HIDDEN + 3) + 1)

    yT = pl.pallas_call(
        kernel,
        out_shape=jax.ShapeDtypeStruct((1, n_pad), jnp.float32),
        grid_spec=pltpu.PrefetchScalarGridSpec(
            num_scalar_prefetch=0,
            grid=grid,
            in_specs=[
                pl.BlockSpec((1, tile_n), batch_map),                 # x^T tile
                pl.BlockSpec((HIDDEN, 1), const_map),                 # W1 (out,in)
                pl.BlockSpec((HIDDEN, 1), const_map),                 # b1 column
                pl.BlockSpec((HIDDEN, HIDDEN), const_map),            # W2
                pl.BlockSpec((HIDDEN, 1), const_map),                 # b2 column
                pl.BlockSpec((1, HIDDEN), const_map),                 # W3
                pl.BlockSpec(memory_space=pltpu.MemorySpace.SMEM),    # b3 scalar
            ],
            out_specs=pl.BlockSpec((1, tile_n), batch_map),
        ),
        compiler_params=pltpu.CompilerParams(
            dimension_semantics=("parallel",),
        ),
        cost_estimate=pl.CostEstimate(
            flops=flops, transcendentals=0, bytes_accessed=bytes_accessed),
    )(xT, w1, b1, w2, b2, w3, b3)

    return yT[:, :N].reshape(N, 1)


def net_regression_forward(x, params):
    """x: (N, 1) float32 (PyTorch layout). Returns (N, 1) float32."""
    w1, b1, w2, b2, w3, b3 = params
    chunk, tile_n, n_pad = _tile_config(x.shape[0])
    return _forward(x, w1, b1, w2, b2, w3, b3, chunk, tile_n, n_pad)


def init_params(key):
    """PyTorch-style default init (U[-1/sqrt(fan_in), 1/sqrt(fan_in)]).
    Weights stored as (out_features, in_features); b1/b2 as (out,1) columns; b3 as (1,)."""
    def linear(k, fan_in, fan_out):
        kw, kb = jax.random.split(k)
        bound = 1.0 / jnp.sqrt(jnp.float32(fan_in))
        w = jax.random.uniform(kw, (fan_out, fan_in), jnp.float32, -bound, bound)
        b = jax.random.uniform(kb, (fan_out,), jnp.float32, -bound, bound)
        return w, b

    k1, k2, k3 = jax.random.split(key, 3)
    w1, b1 = linear(k1, 1, HIDDEN)
    w2, b2 = linear(k2, HIDDEN, HIDDEN)
    w3, b3 = linear(k3, HIDDEN, 1)
    return (w1, b1.reshape(HIDDEN, 1), w2, b2.reshape(HIDDEN, 1), w3, b3)


def reference_forward(x, params):
    w1, b1, w2, b2, w3, b3 = params
    h1 = jnp.maximum(x @ w1.T + b1.T, 0.0)
    h2 = jnp.maximum(h1 @ w2.T + b2.T, 0.0)
    return h2 @ w3.T + b3


if __name__ == "__main__":
    key = jax.random.PRNGKey(0)
    kx, kp = jax.random.split(key)
    params = init_params(kp)

    # Small case (single grid step, single chunk).
    N = 64
    x = jax.random.normal(kx, (N, 1), dtype=jnp.float32)
    y = jax.block_until_ready(net_regression_forward(x, params))
    y_ref = reference_forward(x, params)
    assert y.shape == (N, 1)
    assert jnp.allclose(y, y_ref, atol=1e-5, rtol=1e-5), "mismatch vs JAX reference (N=64)"

    # Larger case exercising multiple chunks and >=2 grid steps (v7x sharding path).
    N2 = 1000
    x2 = jax.random.normal(jax.random.PRNGKey(7), (N2, 1), dtype=jnp.float32)
    y2 = jax.block_until_ready(net_regression_forward(x2, params))
    y2_ref = reference_forward(x2, params)
    assert y2.shape == (N2, 1)
    assert jnp.allclose(y2, y2_ref, atol=1e-5, rtol=1e-5), "mismatch vs JAX reference (N=1000)"

    print("KERNEL_OK")
</pallas_src>

<mosaic_0001>
module attributes {stable_mosaic.version = 11 : i64} {
  func.func @mlp_kernel(%arg0: i32, %arg1: memref<1x128xf32, #tpu.memory_space<vmem>>, %arg2: memref<40x1xf32, #tpu.memory_space<vmem>>, %arg3: memref<40x1xf32, #tpu.memory_space<vmem>>, %arg4: memref<40x40xf32, #tpu.memory_space<vmem>>, %arg5: memref<40x1xf32, #tpu.memory_space<vmem>>, %arg6: memref<1x40xf32, #tpu.memory_space<vmem>>, %arg7: memref<1xf32, #tpu.memory_space<smem>>, %arg8: memref<1x128xf32, #tpu.memory_space<vmem>>) attributes {dimension_semantics = [#tpu.dimension_semantics<parallel>], iteration_bounds = array<i64: 1>, scalar_prefetch = 0 : i64, scratch_operands = 0 : i64, tpu.core_type = #tpu.core_type<tc>, window_params = [{transform_indices = @transform_0, window_bounds = array<i64: 1, 128>}, {pipeline_mode = #tpu.pipeline_mode<synchronous>, transform_indices = @transform_1, window_bounds = array<i64: 40, 1>}, {pipeline_mode = #tpu.pipeline_mode<synchronous>, transform_indices = @transform_2, window_bounds = array<i64: 40, 1>}, {pipeline_mode = #tpu.pipeline_mode<synchronous>, transform_indices = @transform_3, window_bounds = array<i64: 40, 40>}, {pipeline_mode = #tpu.pipeline_mode<synchronous>, transform_indices = @transform_4, window_bounds = array<i64: 40, 1>}, {pipeline_mode = #tpu.pipeline_mode<synchronous>, transform_indices = @transform_5, window_bounds = array<i64: 1, 40>}, {transform_indices = @transform_6, window_bounds = array<i64: 1>}, {transform_indices = @transform_7, window_bounds = array<i64: 1, 128>}]} {
    %c0 = arith.constant 0 : index
    %c0_0 = arith.constant 0 : index
    %0 = vector.load %arg2[%c0, %c0_0] : memref<40x1xf32, #tpu.memory_space<vmem>>, vector<40x1xf32>
    %c0_1 = arith.constant 0 : index
    %c0_2 = arith.constant 0 : index
    %1 = vector.load %arg3[%c0_1, %c0_2] : memref<40x1xf32, #tpu.memory_space<vmem>>, vector<40x1xf32>
    %c0_3 = arith.constant 0 : index
    %c0_4 = arith.constant 0 : index
    %2 = vector.load %arg4[%c0_3, %c0_4] : memref<40x40xf32, #tpu.memory_space<vmem>>, vector<40x40xf32>
    %c0_5 = arith.constant 0 : index
    %c0_6 = arith.constant 0 : index
    %3 = vector.load %arg5[%c0_5, %c0_6] : memref<40x1xf32, #tpu.memory_space<vmem>>, vector<40x1xf32>
    %c0_7 = arith.constant 0 : index
    %c0_8 = arith.constant 0 : index
    %4 = vector.load %arg6[%c0_7, %c0_8] : memref<1x40xf32, #tpu.memory_space<vmem>>, vector<1x40xf32>
    %c0_9 = arith.constant 0 : index
    %5 = memref.load %arg7[%c0_9] : memref<1xf32, #tpu.memory_space<smem>>
    %c0_i32 = arith.constant 0 : i32
    %c128_i32 = arith.constant 128 : i32
    %6 = arith.muli %c0_i32, %c128_i32 : i32
    %7 = tpu.assume_multiple %6, 128 : i32
    %c0_10 = arith.constant 0 : index
    %8 = arith.index_cast %7 : i32 to index
    %9 = vector.load %arg1[%c0_10, %8] : memref<1x128xf32, #tpu.memory_space<vmem>>, vector<1x128xf32>
    %10 = vector.broadcast %0 : vector<40x1xf32> to vector<40x128xf32>
    %11 = vector.broadcast %9 : vector<1x128xf32> to vector<40x128xf32>
    %12 = arith.mulf %10, %11 : vector<40x128xf32>
    %13 = vector.broadcast %1 : vector<40x1xf32> to vector<40x128xf32>
    %14 = arith.addf %12, %13 : vector<40x128xf32>
    %cst = arith.constant 0.000000e+00 : f32
    %15 = vector.broadcast %cst : f32 to vector<40x128xf32>
    %16 = arith.maximumf %14, %15 : vector<40x128xf32>
    %cst_11 = arith.constant dense<0.000000e+00> : vector<40x128xf32>
    %17 = tpu.matmul %2, %16, %cst_11 {dimension_numbers = #tpu.dot_dimension_numbers<[1], [0], [0], [1], [0, 0, 1, 1], [], []>} : vector<40x40xf32>, vector<40x128xf32>, vector<40x128xf32> -> vector<40x128xf32>
    %18 = vector.broadcast %3 : vector<40x1xf32> to vector<40x128xf32>
    %19 = arith.addf %17, %18 : vector<40x128xf32>
    %cst_12 = arith.constant 0.000000e+00 : f32
    %20 = vector.broadcast %cst_12 : f32 to vector<40x128xf32>
    %21 = arith.maximumf %19, %20 : vector<40x128xf32>
    %cst_13 = arith.constant dense<0.000000e+00> : vector<1x128xf32>
    %22 = tpu.matmul %4, %21, %cst_13 {dimension_numbers = #tpu.dot_dimension_numbers<[1], [0], [0], [1], [0, 0, 1, 1], [], []>} : vector<1x40xf32>, vector<40x128xf32>, vector<1x128xf32> -> vector<1x128xf32>
    %23 = vector.broadcast %5 : f32 to vector<1x128xf32>
    %24 = arith.addf %22, %23 : vector<1x128xf32>
    %c0_14 = arith.constant 0 : index
    %25 = arith.index_cast %7 : i32 to index
    %26 = vector.load %arg8[%c0_14, %25] : memref<1x128xf32, #tpu.memory_space<vmem>>, vector<1x128xf32>
    tpu.vector_store %arg8[%c0_14, %25], %24 {strides = array<i32>} : memref<1x128xf32, #tpu.memory_space<vmem>>, vector<1x128xf32>,
    %c1_i32 = arith.constant 1 : i32
    return
  }
  func.func @transform_0(%arg0: i32) -> (i32, i32) {
    %c0_i32 = arith.constant 0 : i32
    %c0_i32_0 = arith.constant 0 : i32
    return %c0_i32, %arg0 : i32, i32
  }
  func.func @transform_1(%arg0: i32) -> (i32, i32) {
    %c0_i32 = arith.constant 0 : i32
    %c0_i32_0 = arith.constant 0 : i32
    %c0_i32_1 = arith.constant 0 : i32
    return %c0_i32, %c0_i32_0 : i32, i32
  }
  func.func @transform_2(%arg0: i32) -> (i32, i32) {
    %c0_i32 = arith.constant 0 : i32
    %c0_i32_0 = arith.constant 0 : i32
    %c0_i32_1 = arith.constant 0 : i32
    return %c0_i32, %c0_i32_0 : i32, i32
  }
  func.func @transform_3(%arg0: i32) -> (i32, i32) {
    %c0_i32 = arith.constant 0 : i32
    %c0_i32_0 = arith.constant 0 : i32
    %c0_i32_1 = arith.constant 0 : i32
    return %c0_i32, %c0_i32_0 : i32, i32
  }
  func.func @transform_4(%arg0: i32) -> (i32, i32) {
    %c0_i32 = arith.constant 0 : i32
    %c0_i32_0 = arith.constant 0 : i32
    %c0_i32_1 = arith.constant 0 : i32
    return %c0_i32, %c0_i32_0 : i32, i32
  }
  func.func @transform_5(%arg0: i32) -> (i32, i32) {
    %c0_i32 = arith.constant 0 : i32
    %c0_i32_0 = arith.constant 0 : i32
    %c0_i32_1 = arith.constant 0 : i32
    return %c0_i32, %c0_i32_0 : i32, i32
  }
  func.func @transform_6(%arg0: i32) -> i32 {
    %c0_i32 = arith.constant 0 : i32
    %c0_i32_0 = arith.constant 0 : i32
    return %c0_i32 : i32
  }
  func.func @transform_7(%arg0: i32) -> (i32, i32) {
    %c0_i32 = arith.constant 0 : i32
    %c0_i32_0 = arith.constant 0 : i32
    return %c0_i32, %arg0 : i32, i32
  }
}

</mosaic_0001>

<llo_original>
// kernel: _forward.1
$region0: #{_forward.1}
  #allocation0 [shape = 'u32[]', space=smem, size = 0x4, offset = 0x4, fixed_abs, tag = 'smem constant byte address 0x4 - core index']
  #allocation1 [shape = 'u32[144,128]{1,0:T(1,128)}', space=vmem, size = 0x12000, scoped, tag = 'internal scratch']
  #allocation2 [shape = 'f32[1]{0:T(128)S(6)}', space=smem, size = 0x200, scoped, tag = 'scoped memory for _forward.1']
  %s0 = inlined_call_operand.vmem [shape: f32[1,128], index: 0, kind: input, shape index: {}]
  %s1 = inlined_call_operand.vmem [shape: f32[40,1], index: 1, kind: input, shape index: {}]
  %s2 = inlined_call_operand.vmem [shape: f32[40,1], index: 2, kind: input, shape index: {}]
  %s3 = inlined_call_operand.vmem [shape: f32[40,40], index: 3, kind: input, shape index: {}]
  %s4 = inlined_call_operand.vmem [shape: f32[40,1], index: 4, kind: input, shape index: {}]
  %s5 = inlined_call_operand.vmem [shape: f32[1,40], index: 5, kind: input, shape index: {}]
  %s6 = inlined_call_operand.<no memory space> [shape: f32[1], index: 6, kind: input, shape index: {}]
  %s7 = inlined_call_operand.vmem [shape: f32[1,128], index: 7, kind: output, shape index: {}]
  %s8 = sld [smem:[#allocation0]]
  $region38: #{_forward.1} parent=0
    _
  %s10 = ssub.s32 1, %s8
  %s11 = scalar_select 0, %s10, %s8
  %12 = sst [smem:[#allocation2]] %s6
  // Predicated region
  $region2: #{_forward.1} parent=0 // pred_check
    _
  $region3: #{_forward.1} parent=0 // pred_check_branch
    %14 = sbr.rel (0) target = $region5
  $region4: #{_forward.1} parent=0 // pred_region
    _
  $region5: #{_forward.1} parent=0 // pred_fallthru
    _
  // Predicated region
  $region6: #{_forward.1} parent=0 // pred_check
    _
  $region7: #{_forward.1} parent=0 // pred_check_branch
    %16 = sbr.rel (0) target = $region9
  $region8: #{_forward.1} parent=0 // pred_region
    _
  $region9: #{_forward.1} parent=0 // pred_fallthru
    _
  // Predicated region
  $region10: #{_forward.1} parent=0 // pred_check
    _
  $region11: #{_forward.1} parent=0 // pred_check_branch
    %18 = sbr.rel (0) target = $region13
  $region12: #{_forward.1} parent=0 // pred_region
    _
  $region13: #{_forward.1} parent=0 // pred_fallthru
    _
  // Predicated region
  $region14: #{_forward.1} parent=0 // pred_check
    _
  $region15: #{_forward.1} parent=0 // pred_check_branch
    %20 = sbr.rel (0) target = $region17
  $region16: #{_forward.1} parent=0 // pred_region
    _
  $region17: #{_forward.1} parent=0 // pred_fallthru
    _
  // Predicated region
  $region18: #{_forward.1} parent=0 // pred_check
    _
  $region19: #{_forward.1} parent=0 // pred_check_branch
    %22 = sbr.rel (0) target = $region21
  $region20: #{_forward.1} parent=0 // pred_region
    _
  $region21: #{_forward.1} parent=0 // pred_fallthru
    _
  // Predicated region
  $region22: #{_forward.1} parent=0 // pred_check
    _
  $region23: #{_forward.1} parent=0 // pred_check_branch
    %24 = sbr.rel (0) target = $region25
  $region24: #{_forward.1} parent=0 // pred_region
    _
  $region25: #{_forward.1} parent=0 // pred_fallthru
    _
  // Predicated region
  $region26: #{_forward.1} parent=0 // pred_check
    _
  $region27: #{_forward.1} parent=0 // pred_check_branch
    %26 = sbr.rel (0) target = $region29
  $region28: #{_forward.1} parent=0 // pred_region
    _
  $region29: #{_forward.1} parent=0 // pred_fallthru
    _
  %v27 = vld [vmem:[%s1] sm:$0xff]
  %v28 = vld [vmem:[%s1 + $0x8] sm:$0xff]
  %v29 = vld [vmem:[%s1 + $0x10] sm:$0xff]
  %v30 = vld [vmem:[%s1 + $0x18] sm:$0xff]
  %v31 = vld [vmem:[%s1 + $0x20] sm:$0xff]
  %v32 = vld [vmem:[%s2] sm:$0xff]
  %v33 = vld [vmem:[%s2 + $0x8] sm:$0xff]
  %v34 = vld [vmem:[%s2 + $0x10] sm:$0xff]
  %v35 = vld [vmem:[%s2 + $0x18] sm:$0xff]
  %v36 = vld [vmem:[%s2 + $0x20] sm:$0xff]
  %v37 = vld [vmem:[%s3] sm:$0xff]
  %v38 = vld [vmem:[%s3 + $0x8] sm:$0xff]
  %v39 = vld [vmem:[%s3 + $0x10] sm:$0xff]
  %v40 = vld [vmem:[%s3 + $0x18] sm:$0xff]
  %v41 = vld [vmem:[%s3 + $0x20] sm:$0xff]
  %v42 = vld [vmem:[%s4] sm:$0xff]
  %v43 = vld [vmem:[%s4 + $0x8] sm:$0xff]
  %v44 = vld [vmem:[%s4 + $0x10] sm:$0xff]
  %v45 = vld [vmem:[%s4 + $0x18] sm:$0xff]
  %v46 = vld [vmem:[%s4 + $0x20] sm:$0xff]
  %v47 = vld [vmem:[%s5] sm:$0x1]
  %s48 = sld [smem:[#allocation2]]
  %v49 = vld [vmem:[%s0] sm:$0x1]
  %51 = vset.pattern.permute.xlu0 0
  %52 = vperm.xlu0 %51, %v27
  %v53 = vpop.permute.xlu0 %52
  %56 = vset.pattern.permute.xlu0 0
  %57 = vperm.xlu0 %56, %v28
  %v58 = vpop.permute.xlu0 %57
  %61 = vset.pattern.permute.xlu0 0
  %62 = vperm.xlu0 %61, %v29
  %v63 = vpop.permute.xlu0 %62
  %66 = vset.pattern.permute.xlu0 0
  %67 = vperm.xlu0 %66, %v30
  %v68 = vpop.permute.xlu0 %67
  %71 = vset.pattern.permute.xlu0 0
  %72 = vperm.xlu0 %71, %v31
  %v73 = vpop.permute.xlu0 %72
  %v76 = vlaneseq
  %v77 = vshrl.u32 %v76, 7
  %v78 = vsub.s32 0, %v77
  %v79 = vrot.slane %v49, %v78
  %v81 = vmul.f32 %v53, %v79
  %v82 = vmul.f32 %v58, %v79
  %v83 = vmul.f32 %v63, %v79
  %v84 = vmul.f32 %v68, %v79
  %v85 = vmul.f32 %v73, %v79
  %87 = vset.pattern.permute.xlu0 0
  %88 = vperm.xlu0 %87, %v32
  %v89 = vpop.permute.xlu0 %88
  %92 = vset.pattern.permute.xlu0 0
  %93 = vperm.xlu0 %92, %v33
  %v94 = vpop.permute.xlu0 %93
  %97 = vset.pattern.permute.xlu0 0
  %98 = vperm.xlu0 %97, %v34
  %v99 = vpop.permute.xlu0 %98
  %102 = vset.pattern.permute.xlu0 0
  %103 = vperm.xlu0 %102, %v35
  %v104 = vpop.permute.xlu0 %103
  %107 = vset.pattern.permute.xlu0 0
  %108 = vperm.xlu0 %107, %v36
  %v109 = vpop.permute.xlu0 %108
  %v111 = vadd.f32 %v81, %v89
  %v112 = vadd.f32 %v82, %v94
  %v113 = vadd.f32 %v83, %v99
  %v114 = vadd.f32 %v84, %v104
  %v115 = vadd.f32 %v85, %v109
  %v116 = vmax.f32 %v111, 0.0
  %v117 = vmax.f32 %v112, 0.0
  %v118 = vmax.f32 %v113, 0.0
  %v119 = vmax.f32 %v114, 0.0
  %v120 = vmax.f32 %v115, 0.0
  %122 = vset.pattern.permute.xlu0 0
  %123 = vperm.xlu0 %122, %v42
  %v124 = vpop.permute.xlu0 %123
  %127 = vset.pattern.permute.xlu0 0
  %128 = vperm.xlu0 %127, %v43
  %v129 = vpop.permute.xlu0 %128
  %132 = vset.pattern.permute.xlu0 0
  %133 = vperm.xlu0 %132, %v44
  %v134 = vpop.permute.xlu0 %133
  %137 = vset.pattern.permute.xlu0 0
  %138 = vperm.xlu0 %137, %v45
  %v139 = vpop.permute.xlu0 %138
  %142 = vset.pattern.permute.xlu0 0
  %143 = vperm.xlu0 %142, %v46
  %v144 = vpop.permute.xlu0 %143
  %vm146 = vcmask 326656
  %v148 = vsel %vm146, %v37, 0
  %v151 = vsel %vm146, %v38, 0
  %v154 = vsel %vm146, %v39, 0
  %v157 = vsel %vm146, %v40, 0
  %v160 = vsel %vm146, %v41, 0
  %162 = vmatprep.subr.mxu0 0.0
  %163 = vmatpush1.msra.mxu0 0.0
  %164 = vmatprep.subr.mxu0 0.0
  %165 = vmatpush1.msra.mxu0 0.0
  %166 = vmatprep.subr.mxu0 0.0
  %167 = vmatpush1.msra.mxu0 0.0
  %168 = vmatprep.subr.mxu0 0.0
  %169 = vmatpush1.msra.mxu0 0.0
  %170 = vmatprep.subr.mxu0 0.0
  %171 = vmatpush1.msra.mxu0 0.0
  %172 = vmatprep.subr.mxu0 0.0
  %173 = vmatpush1.msra.mxu0 0.0
  %174 = vmatprep.subr.mxu0 0.0
  %175 = vmatpush1.msra.mxu0 0.0
  %176 = vmatprep.subr.mxu0 0.0
  %177 = vmatpush1.msra.mxu0 0.0
  %178 = vmatprep.subr.mxu0 0.0
  %179 = vmatpush1.msra.mxu0 0.0
  %180 = vmatprep.subr.mxu0 0.0
  %181 = vmatpush1.msra.mxu0 0.0
  %182 = vmatprep.subr.mxu0 0.0
  %183 = vmatpush1.msra.mxu0 0.0
  %184 = vmatprep.subr.mxu0 0.0
  %185 = vmatpush1.msra.mxu0 %v120
  %186 = vmatprep.subr.mxu0 0.0
  %187 = vmatpush1.msra.mxu0 %v119
  %188 = vmatprep.subr.mxu0 0.0
  %189 = vmatpush1.msra.mxu0 %v118
  %190 = vmatprep.subr.mxu0 0.0
  %191 = vmatpush1.msra.mxu0 %v117
  %192 = vmatprep.subr.mxu0 0.0
  %193 = vmatpush1.msra.mxu0 %v116
  %194 = vmatprep.subr.mxu0 0.0
  %195 = vmatpush2.msra.mxu0 0.0
  %196 = vmatprep.subr.mxu0 0.0
  %197 = vmatpush2.msra.mxu0 0.0
  %198 = vmatprep.subr.mxu0 0.0
  %199 = vmatpush2.msra.mxu0 0.0
  %200 = vmatprep.subr.mxu0 0.0
  %201 = vmatpush2.msra.mxu0 0.0
  %202 = vmatprep.subr.mxu0 0.0
  %203 = vmatpush2.msra.mxu0 0.0
  %204 = vmatprep.subr.mxu0 0.0
  %205 = vmatpush2.msra.mxu0 0.0
  %206 = vmatprep.subr.mxu0 0.0
  %207 = vmatpush2.msra.mxu0 0.0
  %208 = vmatprep.subr.mxu0 0.0
  %209 = vmatpush2.msra.mxu0 0.0
  %210 = vmatprep.subr.mxu0 0.0
  %211 = vmatpush2.msra.mxu0 0.0
  %212 = vmatprep.subr.mxu0 0.0
  %213 = vmatpush2.msra.mxu0 0.0
  %214 = vmatprep.subr.mxu0 0.0
  %215 = vmatpush2.msra.mxu0 0.0
  %216 = vmatprep.subr.mxu0 0.0
  %217 = vmatpush2.msra.mxu0 0.0
  %218 = vmatprep.subr.mxu0 0.0
  %219 = vmatpush2.msra.mxu0 0.0
  %220 = vmatprep.subr.mxu0 0.0
  %221 = vmatpush2.msra.mxu0 0.0
  %222 = vmatprep.subr.mxu0 0.0
  %223 = vmatpush2.msra.mxu0 0.0
  %224 = vmatprep.subr.mxu0 0.0
  %225 = vmatpush2.msra.mxu0 0.0
  %226 = vmatprep.mubr.f32.mxu0 0.0
  %227 = vmatmul.mubr.f32.gmra.mxu0 %v148
  %v228 = vpop.f32.mrf.mxu0
  %v229 = vadd.f32 %v124, %v228
  %v230 = vpop.f32.mrf.mxu0
  %231 = vmatprep.mubr.f32.mxu0 0.0
  %232 = vmatmul.mubr.f32.gmra.mxu0 %v151
  %v233 = vpop.f32.mrf.mxu0
  %v234 = vadd.f32 %v129, %v233
  %v235 = vpop.f32.mrf.mxu0
  %236 = vmatprep.mubr.f32.mxu0 0.0
  %237 = vmatmul.mubr.f32.gmra.mxu0 %v154
  %v238 = vpop.f32.mrf.mxu0
  %v239 = vadd.f32 %v134, %v238
  %v240 = vpop.f32.mrf.mxu0
  %241 = vmatprep.mubr.f32.mxu0 0.0
  %242 = vmatmul.mubr.f32.gmra.mxu0 %v157
  %v243 = vpop.f32.mrf.mxu0
  %v244 = vadd.f32 %v139, %v243
  %v245 = vpop.f32.mrf.mxu0
  %246 = vmatprep.mubr.f32.mxu0 0.0
  %247 = vmatmul.mubr.f32.gmra.mxu0 %v160
  %v248 = vpop.f32.mrf.mxu0
  %v249 = vadd.f32 %v144, %v248
  %v250 = vpop.f32.mrf.mxu0
  %251 = vdwg.mxu0
  %v252 = vmax.f32 %v229, 0.0
  %v253 = vmax.f32 %v234, 0.0
  %v254 = vmax.f32 %v239, 0.0
  %v255 = vmax.f32 %v244, 0.0
  %v256 = vmax.f32 %v249, 0.0
  %v257 = vstv %s48
  %v259 = vsel %vm146, %v47, 0
  %261 = vmatprep.subr.mxu0 0.0
  %262 = vmatpush1.msra.mxu0 0.0
  %263 = vmatprep.subr.mxu0 0.0
  %264 = vmatpush1.msra.mxu0 0.0
  %265 = vmatprep.subr.mxu0 0.0
  %266 = vmatpush1.msra.mxu0 0.0
  %267 = vmatprep.subr.mxu0 0.0
  %268 = vmatpush1.msra.mxu0 0.0
  %269 = vmatprep.subr.mxu0 0.0
  %270 = vmatpush1.msra.mxu0 0.0
  %271 = vmatprep.subr.mxu0 0.0
  %272 = vmatpush1.msra.mxu0 0.0
  %273 = vmatprep.subr.mxu0 0.0
  %274 = vmatpush1.msra.mxu0 0.0
  %275 = vmatprep.subr.mxu0 0.0
  %276 = vmatpush1.msra.mxu0 0.0
  %277 = vmatprep.subr.mxu0 0.0
  %278 = vmatpush1.msra.mxu0 0.0
  %279 = vmatprep.subr.mxu0 0.0
  %280 = vmatpush1.msra.mxu0 0.0
  %281 = vmatprep.subr.mxu0 0.0
  %282 = vmatpush1.msra.mxu0 0.0
  %283 = vmatprep.subr.mxu0 0.0
  %284 = vmatpush1.msra.mxu0 %v256
  %285 = vmatprep.subr.mxu0 0.0
  %286 = vmatpush1.msra.mxu0 %v255
  %287 = vmatprep.subr.mxu0 0.0
  %288 = vmatpush1.msra.mxu0 %v254
  %289 = vmatprep.subr.mxu0 0.0
  %290 = vmatpush1.msra.mxu0 %v253
  %291 = vmatprep.subr.mxu0 0.0
  %292 = vmatpush1.msra.mxu0 %v252
  %293 = vmatprep.subr.mxu0 0.0
  %294 = vmatpush2.msra.mxu0 0.0
  %295 = vmatprep.subr.mxu0 0.0
  %296 = vmatpush2.msra.mxu0 0.0
  %297 = vmatprep.subr.mxu0 0.0
  %298 = vmatpush2.msra.mxu0 0.0
  %299 = vmatprep.subr.mxu0 0.0
  %300 = vmatpush2.msra.mxu0 0.0
  %301 = vmatprep.subr.mxu0 0.0
  %302 = vmatpush2.msra.mxu0 0.0
  %303 = vmatprep.subr.mxu0 0.0
  %304 = vmatpush2.msra.mxu0 0.0
  %305 = vmatprep.subr.mxu0 0.0
  %306 = vmatpush2.msra.mxu0 0.0
  %307 = vmatprep.subr.mxu0 0.0
  %308 = vmatpush2.msra.mxu0 0.0
  %309 = vmatprep.subr.mxu0 0.0
  %310 = vmatpush2.msra.mxu0 0.0
  %311 = vmatprep.subr.mxu0 0.0
  %312 = vmatpush2.msra.mxu0 0.0
  %313 = vmatprep.subr.mxu0 0.0
  %314 = vmatpush2.msra.mxu0 0.0
  %315 = vmatprep.subr.mxu0 0.0
  %316 = vmatpush2.msra.mxu0 0.0
  %317 = vmatprep.subr.mxu0 0.0
  %318 = vmatpush2.msra.mxu0 0.0
  %319 = vmatprep.subr.mxu0 0.0
  %320 = vmatpush2.msra.mxu0 0.0
  %321 = vmatprep.subr.mxu0 0.0
  %322 = vmatpush2.msra.mxu0 0.0
  %323 = vmatprep.subr.mxu0 0.0
  %324 = vmatpush2.msra.mxu0 0.0
  %325 = vmatprep.mubr.f32.mxu0 0.0
  %326 = vmatmul.mubr.f32.gmra.mxu0 %v259
  %v327 = vpop.f32.mrf.mxu0
  %v328 = vadd.f32 %v257, %v327
  %v329 = vpop.f32.mrf.mxu0
  %330 = vdwg.mxu0
  %331 = vst [vmem:[%s7] sm:$0x1] %v328
  // Predicated region
  $region30: #{_forward.1} parent=0 // pred_check
    _
  $region31: #{_forward.1} parent=0 // pred_check_branch
    %333 = sbr.rel (0) target = $region33
  $region32: #{_forward.1} parent=0 // pred_region
    _
  $region33: #{_forward.1} parent=0 // pred_fallthru
    _
  // Predicated region
  $region34: #{_forward.1} parent=0 // pred_check
    _
  $region35: #{_forward.1} parent=0 // pred_check_branch
    %335 = sbr.rel (0) target = $region37
  $region36: #{_forward.1} parent=0 // pred_region
    _
  $region37: #{_forward.1} parent=0 // pred_fallthru
    _

</llo_original>
